<compile_context>
chip_gen: v7x
topology: tpu7x:2x2x1
jax: 0.10.0
libtpu: 0.0.40
codegen_flags: <defaults>
</compile_context>

<pallas_src>
import jax
import jax.numpy as jnp
from jax import lax
from jax.experimental import pallas as pl
from jax.experimental.pallas import tpu as pltpu


def _attention_kernel(all_ref, last_ref, avg_ref, mask_ref,
                      w1t_ref, w2t_ref, w3t_ref, b_ref, w0t_ref,
                      out_ref):
    # Per-grid-step shapes (batch dim squeezed out):
    #   all_ref  : (S, E)   original memory values for this batch element
    #   last_ref : (1, E)
    #   avg_ref  : (1, E)
    #   mask_ref : (S, 1)   int32, nonzero = masked
    #   w1t/w2t/w3t_ref : (E, E)  pre-transposed (y = x @ Wt == x @ W.T)
    #   b_ref    : (1, E)
    #   w0t_ref  : (E, 1)   pre-transposed w0
    #   out_ref  : (1, E)
    all_mem = all_ref[...]                                               # (S, E)

    # Three Linear projections -> MXU matmuls, weights already lane-contiguous.
    a1 = jnp.dot(all_mem, w1t_ref[...],
                 preferred_element_type=jnp.float32)                     # (S, E)
    a2 = jnp.dot(last_ref[...], w2t_ref[...],
                 preferred_element_type=jnp.float32)                     # (1, E)
    a3 = jnp.dot(avg_ref[...], w3t_ref[...],
                 preferred_element_type=jnp.float32)                     # (1, E)

    # Hoisted broadcast term: computed once, then broadcast over the S axis.
    add_term = a2 + a3 + b_ref[...]                                      # (1, E)

    # Elementwise math stays in float32 (v5e has no bf16 VPU/EUP).
    sig = jax.nn.sigmoid(a1 + add_term)                                  # (S, E)

    # w0 projection as an MXU matmul (contraction over E), not mul+lane-reduce.
    alpha = jnp.dot(sig, w0t_ref[...],
                    preferred_element_type=jnp.float32)                  # (S, 1)

    # masked_fill_(mask, 0)
    alpha = jnp.where(mask_ref[...] != 0, 0.0, alpha)                    # (S, 1)

    # Weighted sum over the sequence of the ORIGINAL memory values, as an MXU
    # contraction over S: out[e] = sum_s alpha[s] * all_mem[s, e].
    out_ref[...] = lax.dot_general(
        alpha, all_mem,
        dimension_numbers=(((0,), (0,)), ((), ())),
        preferred_element_type=jnp.float32)                              # (1, E)


def stamp_attention(all_memory, last_memory, average_memory,
                    w1, w2, w3, b, w0, mask=None):
    B, S, E = all_memory.shape
    f32 = jnp.float32

    if mask is None:
        mask_i32 = jnp.zeros((B, S, 1), dtype=jnp.int32)
    else:
        mask_i32 = mask.astype(jnp.int32).reshape(B, S, 1)

    # Pre-transpose the weights once in the wrapper (free in XLA) so the kernel
    # never transposes on the XLU.
    w1t = jnp.asarray(w1, f32).T                     # (E, E)
    w2t = jnp.asarray(w2, f32).T                     # (E, E)
    w3t = jnp.asarray(w3, f32).T                     # (E, E)
    w0t = jnp.asarray(w0, f32).reshape(1, E).T       # (E, 1)
    b2 = jnp.asarray(b, f32).reshape(1, E)           # (1, E)

    all_f = jnp.asarray(all_memory, f32)                             # (B, S, E)
    last_f = jnp.asarray(last_memory, f32).reshape(B, 1, E)          # (B, 1, E)
    avg_f = jnp.asarray(average_memory, f32).reshape(B, 1, E)        # (B, 1, E)

    out = pl.pallas_call(
        _attention_kernel,
        out_shape=jax.ShapeDtypeStruct((B, 1, E), f32),
        grid=(B,),
        in_specs=[
            # Per-batch streamed blocks (batch dim squeezed).
            pl.BlockSpec((None, S, E), lambda bi: (bi, 0, 0)),   # all_memory
            pl.BlockSpec((None, 1, E), lambda bi: (bi, 0, 0)),   # last_memory
            pl.BlockSpec((None, 1, E), lambda bi: (bi, 0, 0)),   # average_memory
            pl.BlockSpec((None, S, 1), lambda bi: (bi, 0, 0)),   # mask
            # Weights / bias: full blocks with constant index_map (resident).
            pl.BlockSpec((E, E), lambda bi: (0, 0)),             # w1^T
            pl.BlockSpec((E, E), lambda bi: (0, 0)),             # w2^T
            pl.BlockSpec((E, E), lambda bi: (0, 0)),             # w3^T
            pl.BlockSpec((1, E), lambda bi: (0, 0)),             # b
            pl.BlockSpec((E, 1), lambda bi: (0, 0)),             # w0^T
        ],
        out_specs=pl.BlockSpec((None, 1, E), lambda bi: (bi, 0, 0)),
        compiler_params=pltpu.CompilerParams(
            dimension_semantics=("parallel",),   # megacore-split on v7x
        ),
    )(all_f, last_f, avg_f, mask_i32, w1t, w2t, w3t, b2, w0t)

    return out.reshape(B, E)


def _reference(all_memory, last_memory, average_memory, w1, w2, w3, b, w0, mask):
    a1 = jnp.einsum('bse,fe->bsf', all_memory, w1)
    a2 = last_memory @ w2.T
    a3 = average_memory @ w3.T
    sig = jax.nn.sigmoid(a1 + a2[:, None, :] + a3[:, None, :] + b[None, None, :])
    alpha = jnp.einsum('bse,oe->bso', sig, w0)[..., 0]
    alpha = jnp.where(mask, 0.0, alpha)
    return jnp.sum(alpha[:, :, None] * all_memory, axis=1)


if __name__ == "__main__":
    B, S, E = 2, 8, 32
    key = jax.random.PRNGKey(0)
    ks = jax.random.split(key, 8)

    all_memory = jax.random.normal(ks[0], (B, S, E), dtype=jnp.float32)
    last_memory = all_memory[:, -1, :]
    average_memory = jnp.mean(all_memory, axis=1)
    mask = jax.random.bernoulli(ks[1], p=0.25, shape=(B, S))

    # Deterministic "Linear" weights, PyTorch convention W[out, in]; b init zeros.
    w1 = 0.1 * jax.random.normal(ks[2], (E, E), dtype=jnp.float32)
    w2 = 0.1 * jax.random.normal(ks[3], (E, E), dtype=jnp.float32)
    w3 = 0.1 * jax.random.normal(ks[4], (E, E), dtype=jnp.float32)
    b = jnp.zeros((E,), dtype=jnp.float32)
    w0 = 0.1 * jax.random.normal(ks[5], (1, E), dtype=jnp.float32)

    out = stamp_attention(all_memory, last_memory, average_memory,
                          w1, w2, w3, b, w0, mask=mask)
    out = jax.block_until_ready(out)

    ref = _reference(all_memory, last_memory, average_memory,
                     w1, w2, w3, b, w0, mask)
    assert out.shape == (B, E)
    assert jnp.allclose(out, ref, atol=1e-5, rtol=1e-5)
    print("KERNEL_OK")
</pallas_src>

<mosaic_0001>
module attributes {stable_mosaic.version = 11 : i64} {
  func.func @_attention_kernel(%arg0: i32, %arg1: memref<1x8x32xf32, #tpu.memory_space<vmem>>, %arg2: memref<1x1x32xf32, #tpu.memory_space<vmem>>, %arg3: memref<1x1x32xf32, #tpu.memory_space<vmem>>, %arg4: memref<1x8x1xi32, #tpu.memory_space<vmem>>, %arg5: memref<32x32xf32, #tpu.memory_space<vmem>>, %arg6: memref<32x32xf32, #tpu.memory_space<vmem>>, %arg7: memref<32x32xf32, #tpu.memory_space<vmem>>, %arg8: memref<1x32xf32, #tpu.memory_space<vmem>>, %arg9: memref<32x1xf32, #tpu.memory_space<vmem>>, %arg10: memref<1x1x32xf32, #tpu.memory_space<vmem>>) attributes {dimension_semantics = [#tpu.dimension_semantics<parallel>], iteration_bounds = array<i64: 2>, scalar_prefetch = 0 : i64, scratch_operands = 0 : i64, tpu.core_type = #tpu.core_type<tc>, window_params = [{transform_indices = @transform_0, window_bounds = array<i64: 1, 8, 32>}, {transform_indices = @transform_1, window_bounds = array<i64: 1, 1, 32>}, {transform_indices = @transform_2, window_bounds = array<i64: 1, 1, 32>}, {transform_indices = @transform_3, window_bounds = array<i64: 1, 8, 1>}, {pipeline_mode = #tpu.pipeline_mode<synchronous>, transform_indices = @transform_4, window_bounds = array<i64: 32, 32>}, {pipeline_mode = #tpu.pipeline_mode<synchronous>, transform_indices = @transform_5, window_bounds = array<i64: 32, 32>}, {pipeline_mode = #tpu.pipeline_mode<synchronous>, transform_indices = @transform_6, window_bounds = array<i64: 32, 32>}, {pipeline_mode = #tpu.pipeline_mode<synchronous>, transform_indices = @transform_7, window_bounds = array<i64: 1, 32>}, {pipeline_mode = #tpu.pipeline_mode<synchronous>, transform_indices = @transform_8, window_bounds = array<i64: 32, 1>}, {transform_indices = @transform_9, window_bounds = array<i64: 1, 1, 32>}]} {
    %c0 = arith.constant 0 : index
    %c0_0 = arith.constant 0 : index
    %c0_1 = arith.constant 0 : index
    %0 = vector.load %arg1[%c0, %c0_0, %c0_1] : memref<1x8x32xf32, #tpu.memory_space<vmem>>, vector<1x8x32xf32>
    %1 = vector.shape_cast %0 : vector<1x8x32xf32> to vector<8x32xf32>
    %c0_2 = arith.constant 0 : index
    %c0_3 = arith.constant 0 : index
    %2 = vector.load %arg5[%c0_2, %c0_3] : memref<32x32xf32, #tpu.memory_space<vmem>>, vector<32x32xf32>
    %cst = arith.constant dense<0.000000e+00> : vector<8x32xf32>
    %3 = tpu.matmul %1, %2, %cst {dimension_numbers = #tpu.dot_dimension_numbers<[1], [0], [0], [1], [0, 0, 1, 1], [], []>} : vector<8x32xf32>, vector<32x32xf32>, vector<8x32xf32> -> vector<8x32xf32>
    %c0_4 = arith.constant 0 : index
    %c0_5 = arith.constant 0 : index
    %c0_6 = arith.constant 0 : index
    %4 = vector.load %arg2[%c0_4, %c0_5, %c0_6] : memref<1x1x32xf32, #tpu.memory_space<vmem>>, vector<1x1x32xf32>
    %5 = vector.shape_cast %4 : vector<1x1x32xf32> to vector<1x32xf32>
    %c0_7 = arith.constant 0 : index
    %c0_8 = arith.constant 0 : index
    %6 = vector.load %arg6[%c0_7, %c0_8] : memref<32x32xf32, #tpu.memory_space<vmem>>, vector<32x32xf32>
    %cst_9 = arith.constant dense<0.000000e+00> : vector<1x32xf32>
    %7 = tpu.matmul %5, %6, %cst_9 {dimension_numbers = #tpu.dot_dimension_numbers<[1], [0], [0], [1], [0, 0, 1, 1], [], []>} : vector<1x32xf32>, vector<32x32xf32>, vector<1x32xf32> -> vector<1x32xf32>
    %c0_10 = arith.constant 0 : index
    %c0_11 = arith.constant 0 : index
    %c0_12 = arith.constant 0 : index
    %8 = vector.load %arg3[%c0_10, %c0_11, %c0_12] : memref<1x1x32xf32, #tpu.memory_space<vmem>>, vector<1x1x32xf32>
    %9 = vector.shape_cast %8 : vector<1x1x32xf32> to vector<1x32xf32>
    %c0_13 = arith.constant 0 : index
    %c0_14 = arith.constant 0 : index
    %10 = vector.load %arg7[%c0_13, %c0_14] : memref<32x32xf32, #tpu.memory_space<vmem>>, vector<32x32xf32>
    %cst_15 = arith.constant dense<0.000000e+00> : vector<1x32xf32>
    %11 = tpu.matmul %9, %10, %cst_15 {dimension_numbers = #tpu.dot_dimension_numbers<[1], [0], [0], [1], [0, 0, 1, 1], [], []>} : vector<1x32xf32>, vector<32x32xf32>, vector<1x32xf32> -> vector<1x32xf32>
    %12 = arith.addf %7, %11 : vector<1x32xf32>
    %c0_16 = arith.constant 0 : index
    %c0_17 = arith.constant 0 : index
    %13 = vector.load %arg8[%c0_16, %c0_17] : memref<1x32xf32, #tpu.memory_space<vmem>>, vector<1x32xf32>
    %14 = arith.addf %12, %13 : vector<1x32xf32>
    %15 = vector.broadcast %14 : vector<1x32xf32> to vector<8x32xf32>
    %16 = arith.addf %3, %15 : vector<8x32xf32>
    %17 = arith.negf %16 : vector<8x32xf32>
    %18 = math.exp %17 : vector<8x32xf32>
    %cst_18 = arith.constant 1.000000e+00 : f32
    %19 = vector.broadcast %cst_18 : f32 to vector<8x32xf32>
    %20 = arith.addf %19, %18 : vector<8x32xf32>
    %21 = arith.divf %19, %20 : vector<8x32xf32>
    %c0_19 = arith.constant 0 : index
    %c0_20 = arith.constant 0 : index
    %22 = vector.load %arg9[%c0_19, %c0_20] : memref<32x1xf32, #tpu.memory_space<vmem>>, vector<32x1xf32>
    %cst_21 = arith.constant dense<0.000000e+00> : vector<8x1xf32>
    %23 = tpu.matmul %21, %22, %cst_21 {dimension_numbers = #tpu.dot_dimension_numbers<[1], [0], [0], [1], [0, 0, 1, 1], [], []>} : vector<8x32xf32>, vector<32x1xf32>, vector<8x1xf32> -> vector<8x1xf32>
    %c0_22 = arith.constant 0 : index
    %c0_23 = arith.constant 0 : index
    %c0_24 = arith.constant 0 : index
    %24 = vector.load %arg4[%c0_22, %c0_23, %c0_24] : memref<1x8x1xi32, #tpu.memory_space<vmem>>, vector<1x8x1xi32>
    %25 = vector.shape_cast %24 : vector<1x8x1xi32> to vector<8x1xi32>
    %c0_i32 = arith.constant 0 : i32
    %26 = vector.broadcast %c0_i32 : i32 to vector<8x1xi32>
    %27 = arith.cmpi ne, %25, %26 : vector<8x1xi32>
    %cst_25 = arith.constant 0.000000e+00 : f32
    %28 = vector.broadcast %cst_25 : f32 to vector<8x1xf32>
    %29 = arith.select %27, %28, %23 : vector<8x1xi1>, vector<8x1xf32>
    %cst_26 = arith.constant dense<0.000000e+00> : vector<1x32xf32>
    %30 = tpu.matmul %29, %1, %cst_26 {dimension_numbers = #tpu.dot_dimension_numbers<[0], [0], [1], [1], [0, 1, 1, 1], [], []>} : vector<8x1xf32>, vector<8x32xf32>, vector<1x32xf32> -> vector<1x32xf32>
    %c0_27 = arith.constant 0 : index
    %c0_28 = arith.constant 0 : index
    %c0_29 = arith.constant 0 : index
    %31 = vector.load %arg10[%c0_27, %c0_28, %c0_29] : memref<1x1x32xf32, #tpu.memory_space<vmem>>, vector<1x1x32xf32>
    %32 = vector.shape_cast %31 : vector<1x1x32xf32> to vector<1x32xf32>
    %33 = vector.shape_cast %30 : vector<1x32xf32> to vector<1x1x32xf32>
    tpu.vector_store %arg10[%c0_27, %c0_28, %c0_29], %33 {strides = array<i32>} : memref<1x1x32xf32, #tpu.memory_space<vmem>>, vector<1x1x32xf32>,
    return
  }
  func.func @transform_0(%arg0: i32) -> (i32, i32, i32) {
    %c0_i32 = arith.constant 0 : i32
    %c0_i32_0 = arith.constant 0 : i32
    %c0_i32_1 = arith.constant 0 : i32
    return %arg0, %c0_i32, %c0_i32_0 : i32, i32, i32
  }
  func.func @transform_1(%arg0: i32) -> (i32, i32, i32) {
    %c0_i32 = arith.constant 0 : i32
    %c0_i32_0 = arith.constant 0 : i32
    %c0_i32_1 = arith.constant 0 : i32
    return %arg0, %c0_i32, %c0_i32_0 : i32, i32, i32
  }
  func.func @transform_2(%arg0: i32) -> (i32, i32, i32) {
    %c0_i32 = arith.constant 0 : i32
    %c0_i32_0 = arith.constant 0 : i32
    %c0_i32_1 = arith.constant 0 : i32
    return %arg0, %c0_i32, %c0_i32_0 : i32, i32, i32
  }
  func.func @transform_3(%arg0: i32) -> (i32, i32, i32) {
    %c0_i32 = arith.constant 0 : i32
    %c0_i32_0 = arith.constant 0 : i32
    %c0_i32_1 = arith.constant 0 : i32
    return %arg0, %c0_i32, %c0_i32_0 : i32, i32, i32
  }
  func.func @transform_4(%arg0: i32) -> (i32, i32) {
    %c0_i32 = arith.constant 0 : i32
    %c0_i32_0 = arith.constant 0 : i32
    %c0_i32_1 = arith.constant 0 : i32
    return %c0_i32, %c0_i32_0 : i32, i32
  }
  func.func @transform_5(%arg0: i32) -> (i32, i32) {
    %c0_i32 = arith.constant 0 : i32
    %c0_i32_0 = arith.constant 0 : i32
    %c0_i32_1 = arith.constant 0 : i32
    return %c0_i32, %c0_i32_0 : i32, i32
  }
  func.func @transform_6(%arg0: i32) -> (i32, i32) {
    %c0_i32 = arith.constant 0 : i32
    %c0_i32_0 = arith.constant 0 : i32
    %c0_i32_1 = arith.constant 0 : i32
    return %c0_i32, %c0_i32_0 : i32, i32
  }
  func.func @transform_7(%arg0: i32) -> (i32, i32) {
    %c0_i32 = arith.constant 0 : i32
    %c0_i32_0 = arith.constant 0 : i32
    %c0_i32_1 = arith.constant 0 : i32
    return %c0_i32, %c0_i32_0 : i32, i32
  }
  func.func @transform_8(%arg0: i32) -> (i32, i32) {
    %c0_i32 = arith.constant 0 : i32
    %c0_i32_0 = arith.constant 0 : i32
    %c0_i32_1 = arith.constant 0 : i32
    return %c0_i32, %c0_i32_0 : i32, i32
  }
  func.func @transform_9(%arg0: i32) -> (i32, i32, i32) {
    %c0_i32 = arith.constant 0 : i32
    %c0_i32_0 = arith.constant 0 : i32
    %c0_i32_1 = arith.constant 0 : i32
    return %arg0, %c0_i32, %c0_i32_0 : i32, i32, i32
  }
}

</mosaic_0001>

<llo_original>
// kernel: tpu_custom_call.1
$region0: #{tpu_custom_call.1}
  #allocation0 [shape = 'u32[]', space=smem, size = 0x4, offset = 0x4, fixed_abs, tag = 'smem constant byte address 0x4 - core index']
  #allocation1 [shape = 'u32[144,128]{1,0:T(1,128)}', space=vmem, size = 0x12000, scoped, tag = 'internal scratch']
  %s0 = inlined_call_operand.hbm [shape: f32[2,8,32], index: 0, kind: input, shape index: {}]
  %s1 = inlined_call_operand.vmem [shape: f32[2,1,32], index: 1, kind: input, shape index: {}]
  %s2 = inlined_call_operand.hbm [shape: f32[2,1,32], index: 2, kind: input, shape index: {}]
  %s3 = inlined_call_operand.vmem [shape: s32[2,8,1], index: 3, kind: input, shape index: {}]
  %s4 = inlined_call_operand.vmem [shape: f32[32,32], index: 4, kind: input, shape index: {}]
  %s5 = inlined_call_operand.vmem [shape: f32[32,32], index: 5, kind: input, shape index: {}]
  %s6 = inlined_call_operand.hbm [shape: f32[32,32], index: 6, kind: input, shape index: {}]
  %s7 = inlined_call_operand.vmem [shape: f32[1,32], index: 7, kind: input, shape index: {}]
  %s8 = inlined_call_operand.vmem [shape: f32[32,1], index: 8, kind: input, shape index: {}]
  %s9 = inlined_call_operand.hbm [shape: f32[2,1,32], index: 9, kind: output, shape index: {}]
  %s10 = sld [smem:[#allocation0]]
  $region81: #{tpu_custom_call.1} parent=0
    _
  %s12 = ssub.s32 1, %s10
  %s13 = scalar_select 0, %s12, %s10
  $region1: #{tpu_custom_call.1} parent=0
    #allocation2 [shape = 'u8[8192]{0}', space=vmem, size = 0x2000, scoped, tag = 'input window, operand 0']
    #allocation3 [shape = 's32[2]{0}', space=sflag, size = 0x8, scoped, tag = 'scoped memory for tpu_custom_call.1']
    #allocation4 [shape = 's32[2]{0}', space=sflag, size = 0x8, scoped, tag = 'scoped memory for tpu_custom_call.1']
    #allocation5 [shape = 'u8[1024]{0}', space=vmem, size = 0x400, scoped, tag = 'input window, operand 2']
    #allocation6 [shape = 's32[2]{0}', space=sflag, size = 0x8, scoped, tag = 'scoped memory for tpu_custom_call.1']
    #allocation7 [shape = 'u8[16384]{0}', space=vmem, size = 0x4000, scoped, tag = 'input window, operand 6, single buffered']
    #allocation8 [shape = 'u8[1024]{0}', space=vmem, size = 0x400, scoped, tag = 'output window, operand 0']
    %14 = vsyncpa [#allocation3], 0
    %s15 = scalar_lea.sflag [#allocation3], 1
    %16 = vsyncpa %s15, 0
    %17 = vsyncpa [#allocation6], 0
    %s18 = scalar_lea.sflag [#allocation6], 1
    %19 = vsyncpa %s18, 0
    %20 = vsyncpa [#allocation4], 0
    %s21 = scalar_lea.sflag [#allocation4], 1
    %22 = vsyncpa %s21, 0
    loop: start=0, step=1, limit=4
    $region2: #{tpu_custom_call.1} parent=1 // loop_pre_header
      _
    $region3: #{tpu_custom_call.1} parent=1 // loop_header
      %s24 = sphi 0, %s28
      %p25 = scmp.ge.s32.totalorder %s24, 4
      %s34 = sphi 0, %s36
      %s37 = sphi 0, %s34
      %s38 = sphi 0, %s37
      %s54 = sphi 0, %s38
      %s60 = sphi 0, %s62
      %s63 = sphi 0, %s60
      %s64 = sphi 0, %s63
      %s80 = sphi 0, %s64
      %s86 = sphi 0, %s88
      %s89 = sphi 0, %s86
      %s90 = sphi 0, %s89
      %s106 = sphi 0, %s90
      %s112 = sphi 0, %s114
      %s115 = sphi 0, %s112
      %s116 = sphi 0, %s115
      %s132 = sphi 0, %s116
      %s136 = sphi 0, %s136
      %s138 = sphi 0, %s136
      %s139 = sphi 0, %s138
      %s153 = sphi 0, %s139
      %s157 = sphi 0, %s157
      %s159 = sphi 0, %s157
      %s160 = sphi 0, %s159
      %s174 = sphi 0, %s160
      %s178 = sphi 0, %s178
      %s180 = sphi 0, %s178
      %s181 = sphi 0, %s180
      %s195 = sphi 0, %s181
      %s199 = sphi 0, %s199
      %s201 = sphi 0, %s199
      %s202 = sphi 0, %s201
      %s216 = sphi 0, %s202
      %s220 = sphi 0, %s220
      %s222 = sphi 0, %s220
      %s223 = sphi 0, %s222
      %s237 = sphi 0, %s223
      %s243 = sphi 0, %s245
      %s246 = sphi 0, %s243
      %s247 = sphi 0, %s246
      %s263 = sphi 0, %s247
    $region4: #{tpu_custom_call.1} parent=1 // loop_header_branch
      %27 = sbr.rel (%p25) target = $region8
    $region5: #{tpu_custom_call.1} parent=1 // loop_body
      %s29 = ssub.s32 %s24, 1
      %s30 = ssub.s32 %s24, 2
      %s31 = sadd.s32 %s24, 1
      %s32 = ssub.s32 %s24, %s31
      %p33 = scmp.eq.s32.totalorder %s32, 0
      %s35 = sadd.s32 %s34, 1
      %s36 = scalar_select %p33, %s34, %s35
      %p39 = pneg %p33
      %p40 = scmp.eq.s32.totalorder %s24, 1
      %p41 = por %p39, %p40
      %p42 = scmp.ne.s32.totalorder %s34, %s37
      %p43 = scmp.eq.s32.totalorder %s24, 0
      %p44 = por %p42, %p43
      %p45 = scmp.ne.s32.totalorder %s34, %s37
      %p46 = scmp.eq.s32.totalorder %s29, 1
      %p47 = por %p45, %p46
      %p48 = scmp.ne.s32.totalorder %s37, %s38
      %p49 = scmp.eq.s32.totalorder %s29, 0
      %p50 = por %p48, %p49
      %p51 = scmp.ne.s32.totalorder %s37, %s38
      %p52 = scmp.eq.s32.totalorder %s30, 1
      %p53 = por %p51, %p52
      %p55 = scmp.ne.s32.totalorder %s38, %s54
      %p56 = scmp.eq.s32.totalorder %s30, 0
      %p57 = por %p55, %p56
      %s58 = ssub.s32 %s24, %s31
      %p59 = scmp.eq.s32.totalorder %s58, 0
      %s61 = sadd.s32 %s60, 1
      %s62 = scalar_select %p59, %s60, %s61
      %p65 = pneg %p59
      %p66 = scmp.eq.s32.totalorder %s24, 1
      %p67 = por %p65, %p66
      %p68 = scmp.ne.s32.totalorder %s60, %s63
      %p69 = scmp.eq.s32.totalorder %s24, 0
      %p70 = por %p68, %p69
      %p71 = scmp.ne.s32.totalorder %s60, %s63
      %p72 = scmp.eq.s32.totalorder %s29, 1
      %p73 = por %p71, %p72
      %p74 = scmp.ne.s32.totalorder %s63, %s64
      %p75 = scmp.eq.s32.totalorder %s29, 0
      %p76 = por %p74, %p75
      %p77 = scmp.ne.s32.totalorder %s63, %s64
      %p78 = scmp.eq.s32.totalorder %s30, 1
      %p79 = por %p77, %p78
      %p81 = scmp.ne.s32.totalorder %s64, %s80
      %p82 = scmp.eq.s32.totalorder %s30, 0
      %p83 = por %p81, %p82
      %s84 = ssub.s32 %s24, %s31
      %p85 = scmp.eq.s32.totalorder %s84, 0
      %s87 = sadd.s32 %s86, 1
      %s88 = scalar_select %p85, %s86, %s87
      %p91 = pneg %p85
      %p92 = scmp.eq.s32.totalorder %s24, 1
      %p93 = por %p91, %p92
      %p94 = scmp.ne.s32.totalorder %s86, %s89
      %p95 = scmp.eq.s32.totalorder %s24, 0
      %p96 = por %p94, %p95
      %p97 = scmp.ne.s32.totalorder %s86, %s89
      %p98 = scmp.eq.s32.totalorder %s29, 1
      %p99 = por %p97, %p98
      %p100 = scmp.ne.s32.totalorder %s89, %s90
      %p101 = scmp.eq.s32.totalorder %s29, 0
      %p102 = por %p100, %p101
      %p103 = scmp.ne.s32.totalorder %s89, %s90
      %p104 = scmp.eq.s32.totalorder %s30, 1
      %p105 = por %p103, %p104
      %p107 = scmp.ne.s32.totalorder %s90, %s106
      %p108 = scmp.eq.s32.totalorder %s30, 0
      %p109 = por %p107, %p108
      %s110 = ssub.s32 %s24, %s31
      %p111 = scmp.eq.s32.totalorder %s110, 0
      %s113 = sadd.s32 %s112, 1
      %s114 = scalar_select %p111, %s112, %s113
      %p117 = pneg %p111
      %p118 = scmp.eq.s32.totalorder %s24, 1
      %p119 = por %p117, %p118
      %p120 = scmp.ne.s32.totalorder %s112, %s115
      %p121 = scmp.eq.s32.totalorder %s24, 0
      %p122 = por %p120, %p121
      %p123 = scmp.ne.s32.totalorder %s112, %s115
      %p124 = scmp.eq.s32.totalorder %s29, 1
      %p125 = por %p123, %p124
      %p126 = scmp.ne.s32.totalorder %s115, %s116
      %p127 = scmp.eq.s32.totalorder %s29, 0
      %p128 = por %p126, %p127
      %p129 = scmp.ne.s32.totalorder %s115, %s116
      %p130 = scmp.eq.s32.totalorder %s30, 1
      %p131 = por %p129, %p130
      %p133 = scmp.ne.s32.totalorder %s116, %s132
      %p134 = scmp.eq.s32.totalorder %s30, 0
      %p135 = por %p133, %p134
      %s137 = sadd.s32 %s136, 1
      %p140 = scmp.eq.s32.totalorder %s24, 1
      %p141 = scmp.ne.s32.totalorder %s136, %s138
      %p142 = scmp.eq.s32.totalorder %s24, 0
      %p143 = por %p141, %p142
      %p144 = scmp.ne.s32.totalorder %s136, %s138
      %p145 = scmp.eq.s32.totalorder %s29, 1
      %p146 = por %p144, %p145
      %p147 = scmp.ne.s32.totalorder %s138, %s139
      %p148 = scmp.eq.s32.totalorder %s29, 0
      %p149 = por %p147, %p148
      %p150 = scmp.ne.s32.totalorder %s138, %s139
      %p151 = scmp.eq.s32.totalorder %s30, 1
      %p152 = por %p150, %p151
      %p154 = scmp.ne.s32.totalorder %s139, %s153
      %p155 = scmp.eq.s32.totalorder %s30, 0
      %p156 = por %p154, %p155
      %s158 = sadd.s32 %s157, 1
      %p161 = scmp.eq.s32.totalorder %s24, 1
      %p162 = scmp.ne.s32.totalorder %s157, %s159
      %p163 = scmp.eq.s32.totalorder %s24, 0
      %p164 = por %p162, %p163
      %p165 = scmp.ne.s32.totalorder %s157, %s159
      %p166 = scmp.eq.s32.totalorder %s29, 1
      %p167 = por %p165, %p166
      %p168 = scmp.ne.s32.totalorder %s159, %s160
      %p169 = scmp.eq.s32.totalorder %s29, 0
      %p170 = por %p168, %p169
      %p171 = scmp.ne.s32.totalorder %s159, %s160
      %p172 = scmp.eq.s32.totalorder %s30, 1
      %p173 = por %p171, %p172
      %p175 = scmp.ne.s32.totalorder %s160, %s174
      %p176 = scmp.eq.s32.totalorder %s30, 0
      %p177 = por %p175, %p176
      %s179 = sadd.s32 %s178, 1
      %p182 = scmp.eq.s32.totalorder %s24, 1
      %p183 = scmp.ne.s32.totalorder %s178, %s180
      %p184 = scmp.eq.s32.totalorder %s24, 0
      %p185 = por %p183, %p184
      %p186 = scmp.ne.s32.totalorder %s178, %s180
      %p187 = scmp.eq.s32.totalorder %s29, 1
      %p188 = por %p186, %p187
      %p189 = scmp.ne.s32.totalorder %s180, %s181
      %p190 = scmp.eq.s32.totalorder %s29, 0
      %p191 = por %p189, %p190
      %p192 = scmp.ne.s32.totalorder %s180, %s181
      %p193 = scmp.eq.s32.totalorder %s30, 1
      %p194 = por %p192, %p193
      %p196 = scmp.ne.s32.totalorder %s181, %s195
      %p197 = scmp.eq.s32.totalorder %s30, 0
      %p198 = por %p196, %p197
      %s200 = sadd.s32 %s199, 1
      %p203 = scmp.eq.s32.totalorder %s24, 1
      %p204 = scmp.ne.s32.totalorder %s199, %s201
      %p205 = scmp.eq.s32.totalorder %s24, 0
      %p206 = por %p204, %p205
      %p207 = scmp.ne.s32.totalorder %s199, %s201
      %p208 = scmp.eq.s32.totalorder %s29, 1
      %p209 = por %p207, %p208
      %p210 = scmp.ne.s32.totalorder %s201, %s202
      %p211 = scmp.eq.s32.totalorder %s29, 0
      %p212 = por %p210, %p211
      %p213 = scmp.ne.s32.totalorder %s201, %s202
      %p214 = scmp.eq.s32.totalorder %s30, 1
      %p215 = por %p213, %p214
      %p217 = scmp.ne.s32.totalorder %s202, %s216
      %p218 = scmp.eq.s32.totalorder %s30, 0
      %p219 = por %p217, %p218
      %s221 = sadd.s32 %s220, 1
      %p224 = scmp.eq.s32.totalorder %s24, 1
      %p225 = scmp.ne.s32.totalorder %s220, %s222
      %p226 = scmp.eq.s32.totalorder %s24, 0
      %p227 = por %p225, %p226
      %p228 = scmp.ne.s32.totalorder %s220, %s222
      %p229 = scmp.eq.s32.totalorder %s29, 1
      %p230 = por %p228, %p229
      %p231 = scmp.ne.s32.totalorder %s222, %s223
      %p232 = scmp.eq.s32.totalorder %s29, 0
      %p233 = por %p231, %p232
      %p234 = scmp.ne.s32.totalorder %s222, %s223
      %p235 = scmp.eq.s32.totalorder %s30, 1
      %p236 = por %p234, %p235
      %p238 = scmp.ne.s32.totalorder %s223, %s237
      %p239 = scmp.eq.s32.totalorder %s30, 0
      %p240 = por %p238, %p239
      %s241 = ssub.s32 %s24, %s31
      %p242 = scmp.eq.s32.totalorder %s241, 0
      %s244 = sadd.s32 %s243, 1
      %s245 = scalar_select %p242, %s243, %s244
      %p248 = pneg %p242
      %p249 = scmp.eq.s32.totalorder %s24, 1
      %p250 = por %p248, %p249
      %p251 = scmp.ne.s32.totalorder %s243, %s246
      %p252 = scmp.eq.s32.totalorder %s24, 0
      %p253 = por %p251, %p252
      %p254 = scmp.ne.s32.totalorder %s243, %s246
      %p255 = scmp.eq.s32.totalorder %s29, 1
      %p256 = por %p254, %p255
      %p257 = scmp.ne.s32.totalorder %s246, %s247
      %p258 = scmp.eq.s32.totalorder %s29, 0
      %p259 = por %p257, %p258
      %p260 = scmp.ne.s32.totalorder %s246, %s247
      %p261 = scmp.eq.s32.totalorder %s30, 1
      %p262 = por %p260, %p261
      %p264 = scmp.ne.s32.totalorder %s247, %s263
      %p265 = scmp.eq.s32.totalorder %s30, 0
      %p266 = por %p264, %p265
      %p267 = scmp.le.s32.totalorder 1, %s24
      %p268 = scmp.lt.s32.totalorder %s24, 3
      %p269 = pnand %p267, %p268
      %p270 = pneg %p269
      // Predicated region
      $region9: #{tpu_custom_call.1} parent=5 // pred_check
        _
      $region10: #{tpu_custom_call.1} parent=5 // pred_check_branch
        %272 = sbr.rel (%p269) target = $region12
      $region11: #{tpu_custom_call.1} parent=5 // pred_region
        %s273 = ssub.s32 %s24, 1
        // Predicated region
        $region13: #{tpu_custom_call.1} parent=11 // pred_check
          %p274 = pneg %p149
        $region14: #{tpu_custom_call.1} parent=11 // pred_check_branch
          %276 = sbr.rel (%p274) target = $region16
        $region15: #{tpu_custom_call.1} parent=11 // pred_region
          _
        $region16: #{tpu_custom_call.1} parent=11 // pred_fallthru
          _
        // Predicated region
        $region17: #{tpu_custom_call.1} parent=11 // pred_check
          %p277 = pneg %p170
        $region18: #{tpu_custom_call.1} parent=11 // pred_check_branch
          %279 = sbr.rel (%p277) target = $region20
        $region19: #{tpu_custom_call.1} parent=11 // pred_region
          _
        $region20: #{tpu_custom_call.1} parent=11 // pred_fallthru
          _
        // Predicated region
        $region21: #{tpu_custom_call.1} parent=11 // pred_check
          %p280 = pneg %p191
        $region22: #{tpu_custom_call.1} parent=11 // pred_check_branch
          %282 = sbr.rel (%p280) target = $region24
        $region23: #{tpu_custom_call.1} parent=11 // pred_region
          %s284 = ssub.s32 512, 512
          %285 = vsyncadd [#allocation6], %s284
          %s286 = sshll.u32 [#allocation7], 4
          %s287 = int_to_ptr.vmem [resolvable:$true] %s286
          %292 = dma.hbm_to_vmem [thread:$0]  %s6, 512, %s287, [#allocation6], 128, 128, 8
        $region24: #{tpu_custom_call.1} parent=11 // pred_fallthru
          _
        // Predicated region
        $region25: #{tpu_custom_call.1} parent=11 // pred_check
          %p293 = pneg %p212
        $region26: #{tpu_custom_call.1} parent=11 // pred_check_branch
          %295 = sbr.rel (%p293) target = $region28
        $region27: #{tpu_custom_call.1} parent=11 // pred_region
          _
        $region28: #{tpu_custom_call.1} parent=11 // pred_fallthru
          _
        // Predicated region
        $region29: #{tpu_custom_call.1} parent=11 // pred_check
          %p296 = pneg %p233
        $region30: #{tpu_custom_call.1} parent=11 // pred_check_branch
          %298 = sbr.rel (%p296) target = $region32
        $region31: #{tpu_custom_call.1} parent=11 // pred_region
          _
        $region32: #{tpu_custom_call.1} parent=11 // pred_fallthru
          _
      $region12: #{tpu_custom_call.1} parent=5 // pred_fallthru
        _
      %p299 = scmp.lt.s32.totalorder %s24, 2
      // Predicated region
      $region33: #{tpu_custom_call.1} parent=5 // pred_check
        %p300 = pneg %p299
      $region34: #{tpu_custom_call.1} parent=5 // pred_check_branch
        %302 = sbr.rel (%p300) target = $region36
      $region35: #{tpu_custom_call.1} parent=5 // pred_region
        // Predicated region
        $region37: #{tpu_custom_call.1} parent=35 // pred_check
          %p303 = pneg %p44
        $region38: #{tpu_custom_call.1} parent=35 // pred_check_branch
          %305 = sbr.rel (%p303) target = $region40
        $region39: #{tpu_custom_call.1} parent=35 // pred_region
          %s306 = sand.u32 %s34, 1
          %s307 = scalar_lea.sflag [#allocation3], %s306
          %s308 = sand.u32 %s34, 1
          %s309 = smul.addr %s308, 8
          %s310 = scalar_lea.vmem [#allocation2], %s309
          %s312 = ssub.s32 128, 128
          %313 = vsyncadd %s307, %s312
          %s314 = smul.addr %s24, 128
          %s315 = scalar_lea.hbm %s0, %s314
          %s317 = sshll.u32 %s310, 4
          %s318 = int_to_ptr.vmem [resolvable:$true] %s317
          %320 = dma.hbm_to_vmem [thread:$0]  %s315, 128, %s318, %s307
        $region40: #{tpu_custom_call.1} parent=35 // pred_fallthru
          _
        // Predicated region
        $region41: #{tpu_custom_call.1} parent=35 // pred_check
          %p321 = pneg %p70
        $region42: #{tpu_custom_call.1} parent=35 // pred_check_branch
          %323 = sbr.rel (%p321) target = $region44
        $region43: #{tpu_custom_call.1} parent=35 // pred_region
          %p324 = scmp.lt.s32.totalorder %s24, 1
          %s325 = scalar_select %p324, %s24, 1
          %s326 = scalar_lea.vmem %s1, %s325
        $region44: #{tpu_custom_call.1} parent=35 // pred_fallthru
          _
        // Predicated region
        $region45: #{tpu_custom_call.1} parent=35 // pred_check
          %p327 = pneg %p96
        $region46: #{tpu_custom_call.1} parent=35 // pred_check_branch
          %329 = sbr.rel (%p327) target = $region48
        $region47: #{tpu_custom_call.1} parent=35 // pred_region
          %s330 = sand.u32 %s24, 1
          %s331 = scalar_lea.sflag [#allocation6], %s330
          %s332 = sand.u32 %s86, 1
          %s333 = scalar_lea.vmem [#allocation5], %s332
          %s335 = ssub.s32 16, 16
          %336 = vsyncadd %s331, %s335
          %s337 = smul.addr %s24, 16
          %s338 = scalar_lea.hbm %s2, %s337
          %s340 = sshll.u32 %s333, 4
          %s341 = int_to_ptr.vmem [resolvable:$true] %s340
          %343 = dma.hbm_to_vmem [thread:$0]  %s338, 16, %s341, %s331
        $region48: #{tpu_custom_call.1} parent=35 // pred_fallthru
          _
        // Predicated region
        $region49: #{tpu_custom_call.1} parent=35 // pred_check
          %p344 = pneg %p122
        $region50: #{tpu_custom_call.1} parent=35 // pred_check_branch
          %346 = sbr.rel (%p344) target = $region52
        $region51: #{tpu_custom_call.1} parent=35 // pred_region
          %p347 = scmp.lt.s32.totalorder %s24, 1
          %s348 = scalar_select %p347, %s24, 1
          %s349 = smul.addr %s348, 8
          %s350 = scalar_lea.vmem %s3, %s349
        $region52: #{tpu_custom_call.1} parent=35 // pred_fallthru
          _
      $region36: #{tpu_custom_call.1} parent=5 // pred_fallthru
        _
      %p351 = scmp.le.s32.totalorder 1, %s24
      %p352 = scmp.lt.s32.totalorder %s24, 3
      %p353 = pnand %p351, %p352
      %p354 = pneg %p353
      // Predicated region
      $region53: #{tpu_custom_call.1} parent=5 // pred_check
        _
      $region54: #{tpu_custom_call.1} parent=5 // pred_check_branch
        %356 = sbr.rel (%p353) target = $region56
      $region55: #{tpu_custom_call.1} parent=5 // pred_region
        %s357 = ssub.s32 %s24, 1
        %s358 = sand.u32 %s37, 1
        %s359 = scalar_lea.sflag [#allocation3], %s358
        %s360 = sand.u32 %s37, 1
        %s361 = smul.addr %s360, 8
        %s362 = scalar_lea.vmem [#allocation2], %s361
        // Predicated region
        $region57: #{tpu_custom_call.1} parent=55 // pred_check
          %p363 = pneg %p50
        $region58: #{tpu_custom_call.1} parent=55 // pred_check_branch
          %365 = sbr.rel (%p363) target = $region60
        $region59: #{tpu_custom_call.1} parent=55 // pred_region
          %366 = dma.done %s359, 128
        $region60: #{tpu_custom_call.1} parent=55 // pred_fallthru
          _
        %s367 = sand.u32 %s29, 1
        %s368 = scalar_lea.sflag [#allocation6], %s367
        %s369 = sand.u32 %s89, 1
        %s370 = scalar_lea.vmem [#allocation5], %s369
        // Predicated region
        $region61: #{tpu_custom_call.1} parent=55 // pred_check
          %p371 = pneg %p102
        $region62: #{tpu_custom_call.1} parent=55 // pred_check_branch
          %373 = sbr.rel (%p371) target = $region64
        $region63: #{tpu_custom_call.1} parent=55 // pred_region
          %374 = dma.done %s368, 16
        $region64: #{tpu_custom_call.1} parent=55 // pred_fallthru
          _
        // Predicated region
        $region65: #{tpu_custom_call.1} parent=55 // pred_check
          %p375 = pneg %p191
        $region66: #{tpu_custom_call.1} parent=55 // pred_check_branch
          %377 = sbr.rel (%p375) target = $region68
        $region67: #{tpu_custom_call.1} parent=55 // pred_region
          %378 = dma.done [#allocation6], 512
        $region68: #{tpu_custom_call.1} parent=55 // pred_fallthru
          _
        %s379 = sand.u32 %s37, 1
        %s380 = scalar_lea.sflag [#allocation3], %s379
        %s381 = sand.u32 %s37, 1
        %s382 = smul.addr %s381, 8
        %s383 = scalar_lea.vmem [#allocation2], %s382
        %p384 = pneg %p50
        %p385 = pneg %p47
        %p386 = scmp.lt.s32.totalorder %s29, 1
        %s387 = scalar_select %p386, %s29, 1
        %s388 = scalar_lea.vmem %s1, %s387
        %p389 = pneg %p76
        %p390 = pneg %p73
        %s391 = sand.u32 %s29, 1
        %s392 = scalar_lea.sflag [#allocation6], %s391
        %s393 = sand.u32 %s89, 1
        %s394 = scalar_lea.vmem [#allocation5], %s393
        %p395 = pneg %p102
        %p396 = pneg %p99
        %p397 = scmp.lt.s32.totalorder %s29, 1
        %s398 = scalar_select %p397, %s29, 1
        %s399 = smul.addr %s398, 8
        %s400 = scalar_lea.vmem %s3, %s399
        %p401 = pneg %p128
        %p402 = pneg %p125
        %p403 = pneg %p149
        %p404 = pneg %p146
        %p405 = pneg %p170
        %p406 = pneg %p167
        %p407 = pneg %p191
        %p408 = pneg %p188
        %p409 = pneg %p212
        %p410 = pneg %p209
        %p411 = pneg %p233
        %p412 = pneg %p230
        %p413 = pneg %p259
        %p414 = pneg %p256
        %s415 = sand.u32 %s246, 1
        %s416 = scalar_lea.sflag [#allocation4], %s415
        %s417 = sand.u32 %s246, 1
        %s418 = scalar_lea.vmem [#allocation8], %s417
        %p419 = scmp.lt.s32.totalorder %s29, 1
        %s420 = scalar_select %p419, %s29, 1
        %s421 = scalar_lea.vmem %s1, %s420
        %p422 = scmp.lt.s32.totalorder %s29, 1
        %s423 = scalar_select %p422, %s29, 1
        %s424 = smul.addr %s423, 8
        %s425 = scalar_lea.vmem %s3, %s424
        %v426 = vld [vmem:[%s362] sm:$0xff]
        %v427 = vld [vmem:[%s4] sm:$0xff]
        %v428 = vld [vmem:[%s4 + $0x8] sm:$0xff]
        %v429 = vld [vmem:[%s4 + $0x10] sm:$0xff]
        %v430 = vld [vmem:[%s4 + $0x18] sm:$0xff]
        %v431 = vld [vmem:[%s421] sm:$0x1]
        %v432 = vld [vmem:[%s5] sm:$0xff]
        %v433 = vld [vmem:[%s5 + $0x8] sm:$0xff]
        %v434 = vld [vmem:[%s5 + $0x10] sm:$0xff]
        %v435 = vld [vmem:[%s5 + $0x18] sm:$0xff]
        %v436 = vld [vmem:[%s370] sm:$0x1]
        %v437 = vld [vmem:[#allocation7] sm:$0xff]
        %v438 = vld [vmem:[#allocation7 + $0x8] sm:$0xff]
        %v439 = vld [vmem:[#allocation7 + $0x10] sm:$0xff]
        %v440 = vld [vmem:[#allocation7 + $0x18] sm:$0xff]
        %vm441 = vcmask 261120
        %v443 = vsel %vm441, %v436, 0
        %445 = vmatprep.subr.mxu0 0.0
        %446 = vmatpush1.msra.mxu0 %v437
        %447 = vmatprep.subr.mxu0 0.0
        %448 = vmatpush1.msra.mxu0 %v438
        %449 = vmatprep.subr.mxu0 0.0
        %450 = vmatpush1.msra.mxu0 %v439
        %451 = vmatprep.subr.mxu0 0.0
        %452 = vmatpush1.msra.mxu0 %v440
        %453 = vmatprep.subr.mxu0 0.0
        %454 = vmatpush1.msra.mxu0 0.0
        %455 = vmatprep.subr.mxu0 0.0
        %456 = vmatpush1.msra.mxu0 0.0
        %457 = vmatprep.subr.mxu0 0.0
        %458 = vmatpush1.msra.mxu0 0.0
        %459 = vmatprep.subr.mxu0 0.0
        %460 = vmatpush1.msra.mxu0 0.0
        %461 = vmatprep.subr.mxu0 0.0
        %462 = vmatpush1.msra.mxu0 0.0
        %463 = vmatprep.subr.mxu0 0.0
        %464 = vmatpush1.msra.mxu0 0.0
        %465 = vmatprep.subr.mxu0 0.0
        %466 = vmatpush1.msra.mxu0 0.0
        %467 = vmatprep.subr.mxu0 0.0
        %468 = vmatpush1.msra.mxu0 0.0
        %469 = vmatprep.subr.mxu0 0.0
        %470 = vmatpush1.msra.mxu0 0.0
        %471 = vmatprep.subr.mxu0 0.0
        %472 = vmatpush1.msra.mxu0 0.0
        %473 = vmatprep.subr.mxu0 0.0
        %474 = vmatpush1.msra.mxu0 0.0
        %475 = vmatprep.subr.mxu0 0.0
        %476 = vmatpush1.msra.mxu0 0.0
        %477 = vmatprep.subr.mxu0 0.0
        %478 = vmatpush1.msra.mxu0 0.0
        %479 = vmatprep.subr.mxu0 0.0
        %480 = vmatpush1.msra.mxu0 0.0
        %481 = vmatprep.subr.mxu0 0.0
        %482 = vmatpush1.msra.mxu0 0.0
        %483 = vmatprep.subr.mxu0 0.0
        %484 = vmatpush1.msra.mxu0 0.0
        %485 = vmatprep.subr.mxu0 0.0
        %486 = vmatpush1.msra.mxu0 0.0
        %487 = vmatprep.subr.mxu0 0.0
        %488 = vmatpush1.msra.mxu0 0.0
        %489 = vmatprep.subr.mxu0 0.0
        %490 = vmatpush1.msra.mxu0 0.0
        %491 = vmatprep.subr.mxu0 0.0
        %492 = vmatpush1.msra.mxu0 0.0
        %493 = vmatprep.subr.mxu0 0.0
        %494 = vmatpush1.msra.mxu0 0.0
        %495 = vmatprep.subr.mxu0 0.0
        %496 = vmatpush1.msra.mxu0 0.0
        %497 = vmatprep.subr.mxu0 0.0
        %498 = vmatpush1.msra.mxu0 0.0
        %499 = vmatprep.subr.mxu0 0.0
        %500 = vmatpush1.msra.mxu0 0.0
        %501 = vmatprep.subr.mxu0 0.0
        %502 = vmatpush1.msra.mxu0 0.0
        %503 = vmatprep.subr.mxu0 0.0
        %504 = vmatpush1.msra.mxu0 0.0
        %505 = vmatprep.subr.mxu0 0.0
        %506 = vmatpush1.msra.mxu0 0.0
        %507 = vmatprep.subr.mxu0 0.0
        %508 = vmatpush1.msra.mxu0 0.0
        %509 = vmatprep.mubr.f32.mxu0 0.0
        %510 = vmatmul.mubr.f32.gmra.mrb[0].mxu0 %v443
        %v511 = vpop.f32.mrb[0].mxu0
        %v512 = vadd.f32 0.0, %v511
        %v513 = vpop.f32.mrb[0].mxu0
        %514 = vdwg.mxu0
        %v516 = vsel %vm441, %v431, 0
        %518 = vmatprep.subr.mxu0 0.0
        %519 = vmatpush1.msra.mxu0 %v432
        %520 = vmatprep.subr.mxu0 0.0
        %521 = vmatpush1.msra.mxu0 %v433
        %522 = vmatprep.subr.mxu0 0.0
        %523 = vmatpush1.msra.mxu0 %v434
        %524 = vmatprep.subr.mxu0 0.0
        %525 = vmatpush1.msra.mxu0 %v435
        %526 = vmatprep.subr.mxu0 0.0
        %527 = vmatpush1.msra.mxu0 0.0
        %528 = vmatprep.subr.mxu0 0.0
        %529 = vmatpush1.msra.mxu0 0.0
        %530 = vmatprep.subr.mxu0 0.0
        %531 = vmatpush1.msra.mxu0 0.0
        %532 = vmatprep.subr.mxu0 0.0
        %533 = vmatpush1.msra.mxu0 0.0
        %534 = vmatprep.subr.mxu0 0.0
        %535 = vmatpush1.msra.mxu0 0.0
        %536 = vmatprep.subr.mxu0 0.0
        %537 = vmatpush1.msra.mxu0 0.0
        %538 = vmatprep.subr.mxu0 0.0
        %539 = vmatpush1.msra.mxu0 0.0
        %540 = vmatprep.subr.mxu0 0.0
        %541 = vmatpush1.msra.mxu0 0.0
        %542 = vmatprep.subr.mxu0 0.0
        %543 = vmatpush1.msra.mxu0 0.0
        %544 = vmatprep.subr.mxu0 0.0
        %545 = vmatpush1.msra.mxu0 0.0
        %546 = vmatprep.subr.mxu0 0.0
        %547 = vmatpush1.msra.mxu0 0.0
        %548 = vmatprep.subr.mxu0 0.0
        %549 = vmatpush1.msra.mxu0 0.0
        %550 = vmatprep.subr.mxu0 0.0
        %551 = vmatpush1.msra.mxu0 0.0
        %552 = vmatprep.subr.mxu0 0.0
        %553 = vmatpush1.msra.mxu0 0.0
        %554 = vmatprep.subr.mxu0 0.0
        %555 = vmatpush1.msra.mxu0 0.0
        %556 = vmatprep.subr.mxu0 0.0
        %557 = vmatpush1.msra.mxu0 0.0
        %558 = vmatprep.subr.mxu0 0.0
        %559 = vmatpush1.msra.mxu0 0.0
        %560 = vmatprep.subr.mxu0 0.0
        %561 = vmatpush1.msra.mxu0 0.0
        %562 = vmatprep.subr.mxu0 0.0
        %563 = vmatpush1.msra.mxu0 0.0
        %564 = vmatprep.subr.mxu0 0.0
        %565 = vmatpush1.msra.mxu0 0.0
        %566 = vmatprep.subr.mxu0 0.0
        %567 = vmatpush1.msra.mxu0 0.0
        %568 = vmatprep.subr.mxu0 0.0
        %569 = vmatpush1.msra.mxu0 0.0
        %570 = vmatprep.subr.mxu0 0.0
        %571 = vmatpush1.msra.mxu0 0.0
        %572 = vmatprep.subr.mxu0 0.0
        %573 = vmatpush1.msra.mxu0 0.0
        %574 = vmatprep.subr.mxu0 0.0
        %575 = vmatpush1.msra.mxu0 0.0
        %576 = vmatprep.subr.mxu0 0.0
        %577 = vmatpush1.msra.mxu0 0.0
        %578 = vmatprep.subr.mxu0 0.0
        %579 = vmatpush1.msra.mxu0 0.0
        %580 = vmatprep.subr.mxu0 0.0
        %581 = vmatpush1.msra.mxu0 0.0
        %582 = vmatprep.mubr.f32.mxu0 0.0
        %583 = vmatmul.mubr.f32.gmra.mrb[0].mxu0 %v516
        %v584 = vpop.f32.mrb[0].mxu0
        %v585 = vadd.f32 %v512, %v584
        %v586 = vpop.f32.mrb[0].mxu0
        %587 = vdwg.mxu0
        %v588 = vld [vmem:[%s7] sm:$0x1]
        %v589 = vadd.f32 %v585, %v588
        %v590 = vlaneseq
        %v591 = vshrl.u32 %v590, 7
        %v592 = vsub.s32 0, %v591
        %v593 = vrot.slane %v589, %v592
        %v595 = vsel %vm441, %v426, 0
        %597 = vmatprep.subr.mxu0 0.0
        %598 = vmatpush1.msra.mxu0 %v427
        %599 = vmatprep.subr.mxu0 0.0
        %600 = vmatpush1.msra.mxu0 %v428
        %601 = vmatprep.subr.mxu0 0.0
        %602 = vmatpush1.msra.mxu0 %v429
        %603 = vmatprep.subr.mxu0 0.0
        %604 = vmatpush1.msra.mxu0 %v430
        %605 = vmatprep.subr.mxu0 0.0
        %606 = vmatpush1.msra.mxu0 0.0
        %607 = vmatprep.subr.mxu0 0.0
        %608 = vmatpush1.msra.mxu0 0.0
        %609 = vmatprep.subr.mxu0 0.0
        %610 = vmatpush1.msra.mxu0 0.0
        %611 = vmatprep.subr.mxu0 0.0
        %612 = vmatpush1.msra.mxu0 0.0
        %613 = vmatprep.subr.mxu0 0.0
        %614 = vmatpush1.msra.mxu0 0.0
        %615 = vmatprep.subr.mxu0 0.0
        %616 = vmatpush1.msra.mxu0 0.0
        %617 = vmatprep.subr.mxu0 0.0
        %618 = vmatpush1.msra.mxu0 0.0
        %619 = vmatprep.subr.mxu0 0.0
        %620 = vmatpush1.msra.mxu0 0.0
        %621 = vmatprep.subr.mxu0 0.0
        %622 = vmatpush1.msra.mxu0 0.0
        %623 = vmatprep.subr.mxu0 0.0
        %624 = vmatpush1.msra.mxu0 0.0
        %625 = vmatprep.subr.mxu0 0.0
        %626 = vmatpush1.msra.mxu0 0.0
        %627 = vmatprep.subr.mxu0 0.0
        %628 = vmatpush1.msra.mxu0 0.0
        %629 = vmatprep.subr.mxu0 0.0
        %630 = vmatpush1.msra.mxu0 0.0
        %631 = vmatprep.subr.mxu0 0.0
        %632 = vmatpush1.msra.mxu0 0.0
        %633 = vmatprep.subr.mxu0 0.0
        %634 = vmatpush1.msra.mxu0 0.0
        %635 = vmatprep.subr.mxu0 0.0
        %636 = vmatpush1.msra.mxu0 0.0
        %637 = vmatprep.subr.mxu0 0.0
        %638 = vmatpush1.msra.mxu0 0.0
        %639 = vmatprep.subr.mxu0 0.0
        %640 = vmatpush1.msra.mxu0 0.0
        %641 = vmatprep.subr.mxu0 0.0
        %642 = vmatpush1.msra.mxu0 0.0
        %643 = vmatprep.subr.mxu0 0.0
        %644 = vmatpush1.msra.mxu0 0.0
        %645 = vmatprep.subr.mxu0 0.0
        %646 = vmatpush1.msra.mxu0 0.0
        %647 = vmatprep.subr.mxu0 0.0
        %648 = vmatpush1.msra.mxu0 0.0
        %649 = vmatprep.subr.mxu0 0.0
        %650 = vmatpush1.msra.mxu0 0.0
        %651 = vmatprep.subr.mxu0 0.0
        %652 = vmatpush1.msra.mxu0 0.0
        %653 = vmatprep.subr.mxu0 0.0
        %654 = vmatpush1.msra.mxu0 0.0
        %655 = vmatprep.subr.mxu0 0.0
        %656 = vmatpush1.msra.mxu0 0.0
        %657 = vmatprep.subr.mxu0 0.0
        %658 = vmatpush1.msra.mxu0 0.0
        %659 = vmatprep.subr.mxu0 0.0
        %660 = vmatpush1.msra.mxu0 0.0
        %661 = vmatprep.mubr.f32.mxu0 0.0
        %662 = vmatmul.mubr.f32.gmra.mrb[0].mxu0 %v595
        %v663 = vpop.f32.mrb[0].mxu0
        %v664 = vadd.f32 %v593, %v663
        %v665 = vpop.f32.mrb[0].mxu0
        %666 = vdwg.mxu0
        %v667 = vxor.u32 %v664, 2147483648
        %v668 = vmul.f32 %v667, 1.442695
        %v669 = vpow.pop %v668
        %v670 = vadd.f32 %v669, 1.0
        %v671 = vrcp.pop %v670
        %v672 = vmul.f32 1.0, %v671
        %v673 = vld [vmem:[%s8] sm:$0xff]
        %v674 = vld [vmem:[%s8 + $0x8] sm:$0xff]
        %v675 = vld [vmem:[%s8 + $0x10] sm:$0xff]
        %v676 = vld [vmem:[%s8 + $0x18] sm:$0xff]
        %v678 = vsel %vm441, %v672, 0
        %680 = vmatprep.subr.mxu0 0.0
        %681 = vmatpush1.msra.mxu0 %v673
        %682 = vmatprep.subr.mxu0 0.0
        %683 = vmatpush1.msra.mxu0 %v674
        %684 = vmatprep.subr.mxu0 0.0
        %685 = vmatpush1.msra.mxu0 %v675
        %686 = vmatprep.subr.mxu0 0.0
        %687 = vmatpush1.msra.mxu0 %v676
        %688 = vmatprep.subr.mxu0 0.0
        %689 = vmatpush1.msra.mxu0 0.0
        %690 = vmatprep.subr.mxu0 0.0
        %691 = vmatpush1.msra.mxu0 0.0
        %692 = vmatprep.subr.mxu0 0.0
        %693 = vmatpush1.msra.mxu0 0.0
        %694 = vmatprep.subr.mxu0 0.0
        %695 = vmatpush1.msra.mxu0 0.0
        %696 = vmatprep.subr.mxu0 0.0
        %697 = vmatpush1.msra.mxu0 0.0
        %698 = vmatprep.subr.mxu0 0.0
        %699 = vmatpush1.msra.mxu0 0.0
        %700 = vmatprep.subr.mxu0 0.0
        %701 = vmatpush1.msra.mxu0 0.0
        %702 = vmatprep.subr.mxu0 0.0
        %703 = vmatpush1.msra.mxu0 0.0
        %704 = vmatprep.subr.mxu0 0.0
        %705 = vmatpush1.msra.mxu0 0.0
        %706 = vmatprep.subr.mxu0 0.0
        %707 = vmatpush1.msra.mxu0 0.0
        %708 = vmatprep.subr.mxu0 0.0
        %709 = vmatpush1.msra.mxu0 0.0
        %710 = vmatprep.subr.mxu0 0.0
        %711 = vmatpush1.msra.mxu0 0.0
        %712 = vmatprep.subr.mxu0 0.0
        %713 = vmatpush1.msra.mxu0 0.0
        %714 = vmatprep.subr.mxu0 0.0
        %715 = vmatpush1.msra.mxu0 0.0
        %716 = vmatprep.subr.mxu0 0.0
        %717 = vmatpush1.msra.mxu0 0.0
        %718 = vmatprep.subr.mxu0 0.0
        %719 = vmatpush1.msra.mxu0 0.0
        %720 = vmatprep.subr.mxu0 0.0
        %721 = vmatpush1.msra.mxu0 0.0
        %722 = vmatprep.subr.mxu0 0.0
        %723 = vmatpush1.msra.mxu0 0.0
        %724 = vmatprep.subr.mxu0 0.0
        %725 = vmatpush1.msra.mxu0 0.0
        %726 = vmatprep.subr.mxu0 0.0
        %727 = vmatpush1.msra.mxu0 0.0
        %728 = vmatprep.subr.mxu0 0.0
        %729 = vmatpush1.msra.mxu0 0.0
        %730 = vmatprep.subr.mxu0 0.0
        %731 = vmatpush1.msra.mxu0 0.0
        %732 = vmatprep.subr.mxu0 0.0
        %733 = vmatpush1.msra.mxu0 0.0
        %734 = vmatprep.subr.mxu0 0.0
        %735 = vmatpush1.msra.mxu0 0.0
        %736 = vmatprep.subr.mxu0 0.0
        %737 = vmatpush1.msra.mxu0 0.0
        %738 = vmatprep.subr.mxu0 0.0
        %739 = vmatpush1.msra.mxu0 0.0
        %740 = vmatprep.subr.mxu0 0.0
        %741 = vmatpush1.msra.mxu0 0.0
        %742 = vmatprep.subr.mxu0 0.0
        %743 = vmatpush1.msra.mxu0 0.0
        %744 = vmatprep.mubr.f32.mxu0 0.0
        %745 = vmatmul.mubr.f32.gmra.mrb[0].mxu0 %v678
        %v746 = vpop.f32.mrb[0].mxu0
        %v747 = vadd.f32 0.0, %v746
        %v748 = vpop.f32.mrb[0].mxu0
        %749 = vdwg.mxu0
        %v750 = vld [vmem:[%s425] sm:$0xff]
        %vm751 = vcmp.ne.s32.totalorder %v750, 0
        %v752 = vsel %vm751, 0.0, %v747
        %753 = vxpose.xlu0.b32.start [1/16] %v752, 128
        %754 = vxpose.xlu0.b32.cont [2/16] 0.0, 128
        %755 = vxpose.xlu0.b32.cont [3/16] 0.0, 128
        %756 = vxpose.xlu0.b32.cont [4/16] 0.0, 128
        %757 = vxpose.xlu0.b32.cont [5/16] 0.0, 128
        %758 = vxpose.xlu0.b32.cont [6/16] 0.0, 128
        %759 = vxpose.xlu0.b32.cont [7/16] 0.0, 128
        %760 = vxpose.xlu0.b32.cont [8/16] 0.0, 128
        %761 = vxpose.xlu0.b32.cont [9/16] 0.0, 128
        %762 = vxpose.xlu0.b32.cont [10/16] 0.0, 128
        %763 = vxpose.xlu0.b32.cont [11/16] 0.0, 128
        %764 = vxpose.xlu0.b32.cont [12/16] 0.0, 128
        %765 = vxpose.xlu0.b32.cont [13/16] 0.0, 128
        %766 = vxpose.xlu0.b32.cont [14/16] 0.0, 128
        %767 = vxpose.xlu0.b32.cont [15/16] 0.0, 128
        %768 = vxpose.xlu0.b32.end [16/16] 0.0, 128
        %v769 = vpop.trf.xlu0
        %v770 = vpop.trf.xlu0
        %v771 = vpop.trf.xlu0
        %v772 = vpop.trf.xlu0
        %v773 = vpop.trf.xlu0
        %v774 = vpop.trf.xlu0
        %v775 = vpop.trf.xlu0
        %v776 = vpop.trf.xlu0
        %v777 = vpop.trf.xlu0
        %v778 = vpop.trf.xlu0
        %v779 = vpop.trf.xlu0
        %v780 = vpop.trf.xlu0
        %v781 = vpop.trf.xlu0
        %v782 = vpop.trf.xlu0
        %v783 = vpop.trf.xlu0
        %v784 = vpop.trf.xlu0
        %vm785 = vcmask 64512
        %v787 = vsel %vm785, %v769, 0
        %789 = vmatprep.subr.mxu0 0.0
        %790 = vmatpush1.msra.mxu0 %v426
        %791 = vmatprep.subr.mxu0 0.0
        %792 = vmatpush1.msra.mxu0 0.0
        %793 = vmatprep.subr.mxu0 0.0
        %794 = vmatpush1.msra.mxu0 0.0
        %795 = vmatprep.subr.mxu0 0.0
        %796 = vmatpush1.msra.mxu0 0.0
        %797 = vmatprep.subr.mxu0 0.0
        %798 = vmatpush1.msra.mxu0 0.0
        %799 = vmatprep.subr.mxu0 0.0
        %800 = vmatpush1.msra.mxu0 0.0
        %801 = vmatprep.subr.mxu0 0.0
        %802 = vmatpush1.msra.mxu0 0.0
        %803 = vmatprep.subr.mxu0 0.0
        %804 = vmatpush1.msra.mxu0 0.0
        %805 = vmatprep.subr.mxu0 0.0
        %806 = vmatpush1.msra.mxu0 0.0
        %807 = vmatprep.subr.mxu0 0.0
        %808 = vmatpush1.msra.mxu0 0.0
        %809 = vmatprep.subr.mxu0 0.0
        %810 = vmatpush1.msra.mxu0 0.0
        %811 = vmatprep.subr.mxu0 0.0
        %812 = vmatpush1.msra.mxu0 0.0
        %813 = vmatprep.subr.mxu0 0.0
        %814 = vmatpush1.msra.mxu0 0.0
        %815 = vmatprep.subr.mxu0 0.0
        %816 = vmatpush1.msra.mxu0 0.0
        %817 = vmatprep.subr.mxu0 0.0
        %818 = vmatpush1.msra.mxu0 0.0
        %819 = vmatprep.subr.mxu0 0.0
        %820 = vmatpush1.msra.mxu0 0.0
        %821 = vmatprep.subr.mxu0 0.0
        %822 = vmatpush1.msra.mxu0 0.0
        %823 = vmatprep.subr.mxu0 0.0
        %824 = vmatpush1.msra.mxu0 0.0
        %825 = vmatprep.subr.mxu0 0.0
        %826 = vmatpush1.msra.mxu0 0.0
        %827 = vmatprep.subr.mxu0 0.0
        %828 = vmatpush1.msra.mxu0 0.0
        %829 = vmatprep.subr.mxu0 0.0
        %830 = vmatpush1.msra.mxu0 0.0
        %831 = vmatprep.subr.mxu0 0.0
        %832 = vmatpush1.msra.mxu0 0.0
        %833 = vmatprep.subr.mxu0 0.0
        %834 = vmatpush1.msra.mxu0 0.0
        %835 = vmatprep.subr.mxu0 0.0
        %836 = vmatpush1.msra.mxu0 0.0
        %837 = vmatprep.subr.mxu0 0.0
        %838 = vmatpush1.msra.mxu0 0.0
        %839 = vmatprep.subr.mxu0 0.0
        %840 = vmatpush1.msra.mxu0 0.0
        %841 = vmatprep.subr.mxu0 0.0
        %842 = vmatpush1.msra.mxu0 0.0
        %843 = vmatprep.subr.mxu0 0.0
        %844 = vmatpush1.msra.mxu0 0.0
        %845 = vmatprep.subr.mxu0 0.0
        %846 = vmatpush1.msra.mxu0 0.0
        %847 = vmatprep.subr.mxu0 0.0
        %848 = vmatpush1.msra.mxu0 0.0
        %849 = vmatprep.subr.mxu0 0.0
        %850 = vmatpush1.msra.mxu0 0.0
        %851 = vmatprep.subr.mxu0 0.0
        %852 = vmatpush1.msra.mxu0 0.0
        %853 = vmatprep.mubr.f32.mxu0 0.0
        %854 = vmatmul.mubr.f32.gmra.mrb[0].mxu0 %v787
        %v855 = vpop.f32.mrb[0].mxu0
        %v856 = vadd.f32 0.0, %v855
        %v857 = vpop.f32.mrb[0].mxu0
        %858 = vdwg.mxu0
        %vm859 = vcmask 253952
        %860 = vst.msk [vmem:[%s418] sm:$0x1] %vm859, %v856
        %s861 = sand.u32 %s246, 1
        %s862 = scalar_lea.sflag [#allocation4], %s861
        %s863 = sand.u32 %s246, 1
        %s864 = scalar_lea.vmem [#allocation8], %s863
        // Predicated region
        $region69: #{tpu_custom_call.1} parent=55 // pred_check
          %p865 = pneg %p256
        $region70: #{tpu_custom_call.1} parent=55 // pred_check_branch
          %867 = sbr.rel (%p865) target = $region72
        $region71: #{tpu_custom_call.1} parent=55 // pred_region
          %s869 = ssub.s32 16, 16
          %870 = vsyncadd %s862, %s869
          %s871 = smul.addr %s29, 16
          %s872 = scalar_lea.hbm %s9, %s871
          %s874 = sshll.u32 %s864, 4
          %s875 = int_to_ptr.vmem [resolvable:$true] %s874
          %877 = dma.vmem_to_hbm [thread:$0]  %s875, 16, %s872, %s862
        $region72: #{tpu_custom_call.1} parent=55 // pred_fallthru
          _
      $region56: #{tpu_custom_call.1} parent=5 // pred_fallthru
        _
      %p878 = scmp.le.s32.totalorder 2, %s24
      // Predicated region
      $region73: #{tpu_custom_call.1} parent=5 // pred_check
        %p879 = pneg %p878
      $region74: #{tpu_custom_call.1} parent=5 // pred_check_branch
        %881 = sbr.rel (%p879) target = $region76
      $region75: #{tpu_custom_call.1} parent=5 // pred_region
        %s882 = ssub.s32 %s24, 2
        // Predicated region
        $region77: #{tpu_custom_call.1} parent=75 // pred_check
          %p883 = pneg %p262
        $region78: #{tpu_custom_call.1} parent=75 // pred_check_branch
          %885 = sbr.rel (%p883) target = $region80
        $region79: #{tpu_custom_call.1} parent=75 // pred_region
          %s886 = sand.u32 %s247, 1
          %s887 = scalar_lea.sflag [#allocation4], %s886
          %s888 = sand.u32 %s247, 1
          %s889 = scalar_lea.vmem [#allocation8], %s888
          %890 = dma.done %s887, 16
        $region80: #{tpu_custom_call.1} parent=75 // pred_fallthru
          _
      $region76: #{tpu_custom_call.1} parent=5 // pred_fallthru
        _
    $region6: #{tpu_custom_call.1} parent=1 // loop_footer
      %s28 = sadd.s32 1, %s24
    $region7: #{tpu_custom_call.1} parent=1 // loop_footer_branch
      %23 = sbr.rel target = $region3
    $region8: #{tpu_custom_call.1} parent=1 // loop_exit
      _
    %891 = vsyncpa [#allocation3], 1
    %s892 = scalar_lea.sflag [#allocation3], 1
    %893 = vsyncpa %s892, 1
    %894 = vsyncpa [#allocation6], 1
    %s895 = scalar_lea.sflag [#allocation6], 1
    %896 = vsyncpa %s895, 1
    %897 = vsyncpa [#allocation4], 1
    %s898 = scalar_lea.sflag [#allocation4], 1
    %899 = vsyncpa %s898, 1

</llo_original>
